<compile_context>
chip_gen: v6e
topology: v6e:2x2x1
jax: 0.10.0
libtpu: 0.0.40
codegen_flags: <defaults>
</compile_context>

<pallas_src>
import jax
import jax.numpy as jnp
from jax.experimental import pallas as pl
from jax.experimental.pallas import tpu as pltpu

EPS = 1e-5
LANE = 128


def transform_net_kernel(x_ref, w_ref, b_ref, gamma_ref, beta_ref, o_ref):
    # fc1: x @ W + b  (MXU, f32 accumulation)
    h = jnp.dot(x_ref[...], w_ref[...], preferred_element_type=jnp.float32)
    h = h + b_ref[...]
    # activation: ReLU (VPU)
    a = jnp.maximum(h, 0.0)
    # BatchNorm1d (training-mode batch statistics, biased variance), folded
    # into a single per-feature scale/shift applied to the [N, TILE] block.
    inv_n = 1.0 / a.shape[0]                         # static constant
    mean = jnp.sum(a, axis=0, keepdims=True) * inv_n
    diff = a - mean
    var = jnp.sum(diff * diff, axis=0, keepdims=True) * inv_n
    scale = gamma_ref[...] * jax.lax.rsqrt(var + EPS)    # rsqrt -> EUP slot
    shift = beta_ref[...] - mean * scale
    o_ref[...] = (a * scale + shift).astype(o_ref.dtype)


def transform_net_forward(x, w, b, gamma, beta):
    """x: [N, D_in] f32, w: [D_in, D_out], b/gamma/beta: [1, D_out]."""
    n, d_in = x.shape
    d_out = w.shape[1]

    # Pad D_out to a lane-dense multiple of 128; prefer 256-wide tiles
    # (v6e/v7x MXU column width) when the padded width allows it.
    d_pad = ((d_out + LANE - 1) // LANE) * LANE
    tile = 256 if (d_pad % 256 == 0) else 128
    if d_pad != d_out:
        pad = ((0, 0), (0, d_pad - d_out))
        w = jnp.pad(w, pad)
        b = jnp.pad(b, pad)
        gamma = jnp.pad(gamma, pad)
        beta = jnp.pad(beta, pad)

    num_tiles = d_pad // tile

    # Per-step VMEM footprint (double-buffered inputs/outputs), with headroom.
    block_bytes = (
        2 * n * d_in * 4          # x block
        + 2 * d_in * tile * 4     # W tile
        + 3 * 2 * tile * 4        # b / gamma / beta tiles
        + 2 * n * tile * 4        # out tile
    )
    vmem_limit = min(64 * 1024 * 1024, max(4 * block_bytes, 8 * 1024 * 1024))

    out = pl.pallas_call(
        transform_net_kernel,
        out_shape=jax.ShapeDtypeStruct((n, d_pad), jnp.float32),
        grid=(num_tiles,),
        in_specs=[
            pl.BlockSpec((n, d_in), lambda j: (0, 0)),       # x resident
            pl.BlockSpec((d_in, tile), lambda j: (0, j)),    # W tile
            pl.BlockSpec((1, tile), lambda j: (0, j)),       # bias tile
            pl.BlockSpec((1, tile), lambda j: (0, j)),       # gamma tile
            pl.BlockSpec((1, tile), lambda j: (0, j)),       # beta tile
        ],
        out_specs=pl.BlockSpec((n, tile), lambda j: (0, j)),
        compiler_params=pltpu.CompilerParams(
            dimension_semantics=("parallel",),               # feeds both v7x TCs
            vmem_limit_bytes=vmem_limit,
        ),
    )(x, w, b, gamma, beta)
    return out[:, :d_out]


def init_params(key, d_in, d_out):
    """Deterministic init matching _initialize_weights:
    Linear weight: xavier_uniform, bias: zeros; BN weight: ones, bias: zeros."""
    bound = (6.0 / (d_in + d_out)) ** 0.5
    # PyTorch weight is [d_out, d_in]; we store the transpose [d_in, d_out].
    w = jax.random.uniform(key, (d_in, d_out), jnp.float32, minval=-bound, maxval=bound)
    b = jnp.zeros((1, d_out), jnp.float32)
    gamma = jnp.ones((1, d_out), jnp.float32)
    beta = jnp.zeros((1, d_out), jnp.float32)
    return w, b, gamma, beta


def _reference(x, w, b, gamma, beta):
    h = jnp.maximum(x @ w + b, 0.0)
    mean = h.mean(axis=0, keepdims=True)
    var = ((h - mean) ** 2).mean(axis=0, keepdims=True)
    return gamma * (h - mean) * jax.lax.rsqrt(var + EPS) + beta


if __name__ == "__main__":
    key = jax.random.PRNGKey(0)

    # Case 1: tiny module-consistent shapes (D_out padded 64 -> 128, one tile).
    # Case 2: wider output exercising the multi-tile "parallel" feature grid.
    for (N, D_IN, D_OUT) in [(8, 32, 64), (16, 32, 384)]:
        kx, kw = jax.random.split(jax.random.fold_in(key, D_OUT))
        x = jax.random.normal(kx, (N, D_IN), jnp.float32)
        w, b, gamma, beta = init_params(kw, D_IN, D_OUT)

        out = transform_net_forward(x, w, b, gamma, beta)
        jax.block_until_ready(out)

        ref = _reference(x, w, b, gamma, beta)
        assert out.shape == (N, D_OUT), f"bad shape {out.shape}"
        assert jnp.allclose(out, ref, atol=1e-4, rtol=1e-4), "mismatch vs reference"

    print("KERNEL_OK")
</pallas_src>

<mosaic_0001>
module attributes {stable_mosaic.version = 11 : i64} {
  func.func @transform_net_kernel(%arg0: i32, %arg1: memref<8x32xf32, #tpu.memory_space<vmem>>, %arg2: memref<32x128xf32, #tpu.memory_space<vmem>>, %arg3: memref<1x128xf32, #tpu.memory_space<vmem>>, %arg4: memref<1x128xf32, #tpu.memory_space<vmem>>, %arg5: memref<1x128xf32, #tpu.memory_space<vmem>>, %arg6: memref<8x128xf32, #tpu.memory_space<vmem>>) attributes {dimension_semantics = [#tpu.dimension_semantics<parallel>], iteration_bounds = array<i64: 1>, scalar_prefetch = 0 : i64, scratch_operands = 0 : i64, tpu.core_type = #tpu.core_type<tc>, window_params = [{pipeline_mode = #tpu.pipeline_mode<synchronous>, transform_indices = @transform_0, window_bounds = array<i64: 8, 32>}, {transform_indices = @transform_1, window_bounds = array<i64: 32, 128>}, {transform_indices = @transform_2, window_bounds = array<i64: 1, 128>}, {transform_indices = @transform_3, window_bounds = array<i64: 1, 128>}, {transform_indices = @transform_4, window_bounds = array<i64: 1, 128>}, {transform_indices = @transform_5, window_bounds = array<i64: 8, 128>}]} {
    %c0 = arith.constant 0 : index
    %c0_0 = arith.constant 0 : index
    %0 = vector.load %arg1[%c0, %c0_0] : memref<8x32xf32, #tpu.memory_space<vmem>>, vector<8x32xf32>
    %c0_1 = arith.constant 0 : index
    %c0_2 = arith.constant 0 : index
    %1 = vector.load %arg2[%c0_1, %c0_2] : memref<32x128xf32, #tpu.memory_space<vmem>>, vector<32x128xf32>
    %cst = arith.constant dense<0.000000e+00> : vector<8x128xf32>
    %2 = tpu.matmul %0, %1, %cst {dimension_numbers = #tpu.dot_dimension_numbers<[1], [0], [0], [1], [0, 0, 1, 1], [], []>} : vector<8x32xf32>, vector<32x128xf32>, vector<8x128xf32> -> vector<8x128xf32>
    %c0_3 = arith.constant 0 : index
    %c0_4 = arith.constant 0 : index
    %3 = vector.load %arg3[%c0_3, %c0_4] : memref<1x128xf32, #tpu.memory_space<vmem>>, vector<1x128xf32>
    %4 = vector.broadcast %3 : vector<1x128xf32> to vector<8x128xf32>
    %5 = arith.addf %2, %4 : vector<8x128xf32>
    %cst_5 = arith.constant 0.000000e+00 : f32
    %6 = vector.broadcast %cst_5 : f32 to vector<8x128xf32>
    %7 = arith.maximumf %5, %6 : vector<8x128xf32>
    %cst_6 = arith.constant dense<0.000000e+00> : vector<128xf32>
    %8 = vector.multi_reduction <add>, %7, %cst_6 [0] : vector<8x128xf32> to vector<128xf32>
    %9 = vector.shape_cast %8 : vector<128xf32> to vector<1x128xf32>
    %cst_7 = arith.constant 1.250000e-01 : f32
    %10 = vector.broadcast %cst_7 : f32 to vector<1x128xf32>
    %11 = arith.mulf %9, %10 : vector<1x128xf32>
    %12 = vector.broadcast %11 : vector<1x128xf32> to vector<8x128xf32>
    %13 = arith.subf %7, %12 : vector<8x128xf32>
    %14 = arith.mulf %13, %13 : vector<8x128xf32>
    %cst_8 = arith.constant dense<0.000000e+00> : vector<128xf32>
    %15 = vector.multi_reduction <add>, %14, %cst_8 [0] : vector<8x128xf32> to vector<128xf32>
    %16 = vector.shape_cast %15 : vector<128xf32> to vector<1x128xf32>
    %cst_9 = arith.constant 1.250000e-01 : f32
    %17 = vector.broadcast %cst_9 : f32 to vector<1x128xf32>
    %18 = arith.mulf %16, %17 : vector<1x128xf32>
    %c0_10 = arith.constant 0 : index
    %c0_11 = arith.constant 0 : index
    %19 = vector.load %arg4[%c0_10, %c0_11] : memref<1x128xf32, #tpu.memory_space<vmem>>, vector<1x128xf32>
    %cst_12 = arith.constant 9.99999974E-6 : f32
    %20 = vector.broadcast %cst_12 : f32 to vector<1x128xf32>
    %21 = arith.addf %18, %20 : vector<1x128xf32>
    %22 = math.rsqrt %21 : vector<1x128xf32>
    %23 = arith.mulf %19, %22 : vector<1x128xf32>
    %c0_13 = arith.constant 0 : index
    %c0_14 = arith.constant 0 : index
    %24 = vector.load %arg5[%c0_13, %c0_14] : memref<1x128xf32, #tpu.memory_space<vmem>>, vector<1x128xf32>
    %25 = arith.mulf %11, %23 : vector<1x128xf32>
    %26 = arith.subf %24, %25 : vector<1x128xf32>
    %27 = vector.broadcast %23 : vector<1x128xf32> to vector<8x128xf32>
    %28 = arith.mulf %7, %27 : vector<8x128xf32>
    %29 = vector.broadcast %26 : vector<1x128xf32> to vector<8x128xf32>
    %30 = arith.addf %28, %29 : vector<8x128xf32>
    %c0_15 = arith.constant 0 : index
    %c0_16 = arith.constant 0 : index
    %31 = vector.load %arg6[%c0_15, %c0_16] : memref<8x128xf32, #tpu.memory_space<vmem>>, vector<8x128xf32>
    tpu.vector_store %arg6[%c0_15, %c0_16], %30 {strides = array<i32>} : memref<8x128xf32, #tpu.memory_space<vmem>>, vector<8x128xf32>,
    return
  }
  func.func @transform_0(%arg0: i32) -> (i32, i32) {
    %c0_i32 = arith.constant 0 : i32
    %c0_i32_0 = arith.constant 0 : i32
    %c0_i32_1 = arith.constant 0 : i32
    return %c0_i32, %c0_i32_0 : i32, i32
  }
  func.func @transform_1(%arg0: i32) -> (i32, i32) {
    %c0_i32 = arith.constant 0 : i32
    %c0_i32_0 = arith.constant 0 : i32
    return %c0_i32, %arg0 : i32, i32
  }
  func.func @transform_2(%arg0: i32) -> (i32, i32) {
    %c0_i32 = arith.constant 0 : i32
    %c0_i32_0 = arith.constant 0 : i32
    return %c0_i32, %arg0 : i32, i32
  }
  func.func @transform_3(%arg0: i32) -> (i32, i32) {
    %c0_i32 = arith.constant 0 : i32
    %c0_i32_0 = arith.constant 0 : i32
    return %c0_i32, %arg0 : i32, i32
  }
  func.func @transform_4(%arg0: i32) -> (i32, i32) {
    %c0_i32 = arith.constant 0 : i32
    %c0_i32_0 = arith.constant 0 : i32
    return %c0_i32, %arg0 : i32, i32
  }
  func.func @transform_5(%arg0: i32) -> (i32, i32) {
    %c0_i32 = arith.constant 0 : i32
    %c0_i32_0 = arith.constant 0 : i32
    return %c0_i32, %arg0 : i32, i32
  }
}

</mosaic_0001>

<llo_original>
// kernel: tpu_custom_call.1
$region0: #{tpu_custom_call.1}
  #allocation0 [shape = 'u32[]', space=smem, size = 0x4, offset = 0x4, fixed_abs, tag = 'smem constant byte address 0x4 - core index']
  #allocation1 [shape = 'u32[144,128]{1,0:T(1,128)}', space=vmem, size = 0x12000, scoped, tag = 'internal scratch']
  %s0 = inlined_call_operand.hbm [shape: f32[8,32], index: 0, kind: input, shape index: {}]
  %s1 = inlined_call_operand.hbm [shape: f32[32,128], index: 1, kind: input, shape index: {}]
  %s2 = inlined_call_operand.vmem [shape: f32[1,128], index: 2, kind: input, shape index: {}]
  %s3 = inlined_call_operand.vmem [shape: f32[1,128], index: 3, kind: input, shape index: {}]
  %s4 = inlined_call_operand.vmem [shape: f32[1,128], index: 4, kind: input, shape index: {}]
  %s5 = inlined_call_operand.hbm [shape: f32[8,128], index: 5, kind: output, shape index: {}]
  %s6 = sld [smem:[#allocation0]]
  $region38: #{tpu_custom_call.1} parent=0
    _
  %s8 = ssub.s32 1, %s6
  %s9 = scalar_select 0, %s8, %s6
  $region1: #{tpu_custom_call.1} parent=0
    #allocation2 [shape = 'u8[4096]{0}', space=vmem, size = 0x1000, scoped, tag = 'input window, operand 0, single buffered']
    #allocation3 [shape = 's32[1]{0}', space=sflag, size = 0x4, scoped, tag = 'scoped memory for tpu_custom_call.1']
    #allocation4 [shape = 's32[1]{0}', space=sflag, size = 0x4, scoped, tag = 'scoped memory for tpu_custom_call.1']
    #allocation5 [shape = 'u8[16384]{0}', space=vmem, size = 0x4000, scoped, tag = 'input window, operand 1, single buffered']
    #allocation6 [shape = 's32[1]{0}', space=sflag, size = 0x4, scoped, tag = 'scoped memory for tpu_custom_call.1']
    #allocation7 [shape = 'u8[4096]{0}', space=vmem, size = 0x1000, scoped, tag = 'output window, operand 0, single buffered']
    %10 = vsyncpa [#allocation3], 0
    %11 = vsyncpa [#allocation6], 0
    %12 = vsyncpa [#allocation4], 0
    // Predicated region
    $region2: #{tpu_custom_call.1} parent=1 // pred_check
      _
    $region3: #{tpu_custom_call.1} parent=1 // pred_check_branch
      %14 = sbr.rel (0) target = $region5
    $region4: #{tpu_custom_call.1} parent=1 // pred_region
      %s16 = ssub.s32 128, 128
      %17 = vsyncadd [#allocation3], %s16
      %s19 = sshll.u32 [#allocation2], 4
      %s20 = int_to_ptr.vmem [resolvable:$true] %s19
      %22 = dma.hbm_to_vmem [thread:$0]  %s0, 128, %s20, [#allocation3]
    $region5: #{tpu_custom_call.1} parent=1 // pred_fallthru
      _
    // Predicated region
    $region6: #{tpu_custom_call.1} parent=1 // pred_check
      _
    $region7: #{tpu_custom_call.1} parent=1 // pred_check_branch
      %24 = sbr.rel (0) target = $region9
    $region8: #{tpu_custom_call.1} parent=1 // pred_region
      %s26 = ssub.s32 512, 512
      %27 = vsyncadd [#allocation6], %s26
      %s28 = sshll.u32 [#allocation5], 4
      %s29 = int_to_ptr.vmem [resolvable:$true] %s28
      %34 = dma.hbm_to_vmem [thread:$0]  %s1, 512, %s29, [#allocation6], 128, 128, 8
    $region9: #{tpu_custom_call.1} parent=1 // pred_fallthru
      _
    // Predicated region
    $region10: #{tpu_custom_call.1} parent=1 // pred_check
      _
    $region11: #{tpu_custom_call.1} parent=1 // pred_check_branch
      %36 = sbr.rel (0) target = $region13
    $region12: #{tpu_custom_call.1} parent=1 // pred_region
      _
    $region13: #{tpu_custom_call.1} parent=1 // pred_fallthru
      _
    // Predicated region
    $region14: #{tpu_custom_call.1} parent=1 // pred_check
      _
    $region15: #{tpu_custom_call.1} parent=1 // pred_check_branch
      %38 = sbr.rel (0) target = $region17
    $region16: #{tpu_custom_call.1} parent=1 // pred_region
      _
    $region17: #{tpu_custom_call.1} parent=1 // pred_fallthru
      _
    // Predicated region
    $region18: #{tpu_custom_call.1} parent=1 // pred_check
      _
    $region19: #{tpu_custom_call.1} parent=1 // pred_check_branch
      %40 = sbr.rel (0) target = $region21
    $region20: #{tpu_custom_call.1} parent=1 // pred_region
      _
    $region21: #{tpu_custom_call.1} parent=1 // pred_fallthru
      _
    // Predicated region
    $region22: #{tpu_custom_call.1} parent=1 // pred_check
      _
    $region23: #{tpu_custom_call.1} parent=1 // pred_check_branch
      %42 = sbr.rel (0) target = $region25
    $region24: #{tpu_custom_call.1} parent=1 // pred_region
      %43 = dma.done [#allocation3], 128
    $region25: #{tpu_custom_call.1} parent=1 // pred_fallthru
      _
    // Predicated region
    $region26: #{tpu_custom_call.1} parent=1 // pred_check
      _
    $region27: #{tpu_custom_call.1} parent=1 // pred_check_branch
      %45 = sbr.rel (0) target = $region29
    $region28: #{tpu_custom_call.1} parent=1 // pred_region
      %46 = dma.done [#allocation6], 512
    $region29: #{tpu_custom_call.1} parent=1 // pred_fallthru
      _
    %v47 = vld [vmem:[#allocation2] sm:$0xff]
    %v48 = vld [vmem:[#allocation5] sm:$0xff]
    %v49 = vld [vmem:[#allocation5 + $0x8] sm:$0xff]
    %v50 = vld [vmem:[#allocation5 + $0x10] sm:$0xff]
    %v51 = vld [vmem:[#allocation5 + $0x18] sm:$0xff]
    %v52 = vld [vmem:[%s2] sm:$0x1]
    %v54 = vlaneseq
    %v55 = vshrl.u32 %v54, 7
    %v56 = vsub.s32 0, %v55
    %v57 = vrot.slane %v52, %v56
    %vm59 = vcmask 261120
    %v61 = vsel %vm59, %v47, 0
    %63 = vmatprep.subr.mxu0 0.0
    %64 = vmatpush1.msra.mxu0 0.0
    %65 = vmatprep.subr.mxu0 0.0
    %66 = vmatpush1.msra.mxu0 0.0
    %67 = vmatprep.subr.mxu0 0.0
    %68 = vmatpush1.msra.mxu0 0.0
    %69 = vmatprep.subr.mxu0 0.0
    %70 = vmatpush1.msra.mxu0 0.0
    %71 = vmatprep.subr.mxu0 0.0
    %72 = vmatpush1.msra.mxu0 0.0
    %73 = vmatprep.subr.mxu0 0.0
    %74 = vmatpush1.msra.mxu0 0.0
    %75 = vmatprep.subr.mxu0 0.0
    %76 = vmatpush1.msra.mxu0 0.0
    %77 = vmatprep.subr.mxu0 0.0
    %78 = vmatpush1.msra.mxu0 0.0
    %79 = vmatprep.subr.mxu0 0.0
    %80 = vmatpush1.msra.mxu0 0.0
    %81 = vmatprep.subr.mxu0 0.0
    %82 = vmatpush1.msra.mxu0 0.0
    %83 = vmatprep.subr.mxu0 0.0
    %84 = vmatpush1.msra.mxu0 0.0
    %85 = vmatprep.subr.mxu0 0.0
    %86 = vmatpush1.msra.mxu0 0.0
    %87 = vmatprep.subr.mxu0 0.0
    %88 = vmatpush1.msra.mxu0 %v51
    %89 = vmatprep.subr.mxu0 0.0
    %90 = vmatpush1.msra.mxu0 %v50
    %91 = vmatprep.subr.mxu0 0.0
    %92 = vmatpush1.msra.mxu0 %v49
    %93 = vmatprep.subr.mxu0 0.0
    %94 = vmatpush1.msra.mxu0 %v48
    %95 = vmatprep.subr.mxu0 0.0
    %96 = vmatpush2.msra.mxu0 0.0
    %97 = vmatprep.subr.mxu0 0.0
    %98 = vmatpush2.msra.mxu0 0.0
    %99 = vmatprep.subr.mxu0 0.0
    %100 = vmatpush2.msra.mxu0 0.0
    %101 = vmatprep.subr.mxu0 0.0
    %102 = vmatpush2.msra.mxu0 0.0
    %103 = vmatprep.subr.mxu0 0.0
    %104 = vmatpush2.msra.mxu0 0.0
    %105 = vmatprep.subr.mxu0 0.0
    %106 = vmatpush2.msra.mxu0 0.0
    %107 = vmatprep.subr.mxu0 0.0
    %108 = vmatpush2.msra.mxu0 0.0
    %109 = vmatprep.subr.mxu0 0.0
    %110 = vmatpush2.msra.mxu0 0.0
    %111 = vmatprep.subr.mxu0 0.0
    %112 = vmatpush2.msra.mxu0 0.0
    %113 = vmatprep.subr.mxu0 0.0
    %114 = vmatpush2.msra.mxu0 0.0
    %115 = vmatprep.subr.mxu0 0.0
    %116 = vmatpush2.msra.mxu0 0.0
    %117 = vmatprep.subr.mxu0 0.0
    %118 = vmatpush2.msra.mxu0 0.0
    %119 = vmatprep.subr.mxu0 0.0
    %120 = vmatpush2.msra.mxu0 0.0
    %121 = vmatprep.subr.mxu0 0.0
    %122 = vmatpush2.msra.mxu0 0.0
    %123 = vmatprep.subr.mxu0 0.0
    %124 = vmatpush2.msra.mxu0 0.0
    %125 = vmatprep.subr.mxu0 0.0
    %126 = vmatpush2.msra.mxu0 0.0
    %127 = vmatprep.mubr.f32.mxu0 0.0
    %128 = vmatmul.mubr.f32.gmra.mxu0 %v61
    %v129 = vpop.f32.mrf.mxu0
    %v130 = vadd.f32 %v57, %v129
    %v131 = vpop.f32.mrf.mxu0
    %132 = vdwg.mxu0
    %v133 = vmax.f32 %v130, 0.0
    %v134 = vrot.slane %v133, 4
    %v135 = vadd.f32 %v133, %v134
    %v136 = vrot.slane %v135, 2
    %v137 = vadd.f32 %v135, %v136
    %v138 = vrot.slane %v137, 1
    %v139 = vadd.f32 %v137, %v138
    %v140 = vmul.f32 %v139, 0.125
    %v141 = vsub.f32 %v133, %v140
    %v142 = vmul.f32 %v141, %v141
    %v143 = vrot.slane %v142, 4
    %v144 = vadd.f32 %v142, %v143
    %v145 = vrot.slane %v144, 2
    %v146 = vadd.f32 %v144, %v145
    %v147 = vrot.slane %v146, 1
    %v148 = vadd.f32 %v146, %v147
    %v149 = vmul.f32 %v148, 0.125
    %v150 = vld [vmem:[%s3] sm:$0x1]
    %v151 = vadd.f32 %v149, 1e-05
    %v152 = vrsqrt.pop %v151
    %v153 = vmul.f32 %v150, %v152
    %v154 = vld [vmem:[%s4] sm:$0x1]
    %v155 = vmul.f32 %v140, %v153
    %v156 = vsub.f32 %v154, %v155
    %v158 = vlaneseq
    %v159 = vshrl.u32 %v158, 7
    %v160 = vsub.s32 0, %v159
    %v161 = vrot.slane %v153, %v160
    %v163 = vmul.f32 %v133, %v161
    %v165 = vlaneseq
    %v166 = vshrl.u32 %v165, 7
    %v167 = vsub.s32 0, %v166
    %v168 = vrot.slane %v156, %v167
    %v170 = vadd.f32 %v163, %v168
    %171 = vst [vmem:[#allocation7] sm:$0xff] %v170
    // Predicated region
    $region30: #{tpu_custom_call.1} parent=1 // pred_check
      _
    $region31: #{tpu_custom_call.1} parent=1 // pred_check_branch
      %173 = sbr.rel (0) target = $region33
    $region32: #{tpu_custom_call.1} parent=1 // pred_region
      %s175 = ssub.s32 128, 128
      %176 = vsyncadd [#allocation4], %s175
      %s178 = sshll.u32 [#allocation7], 4
      %s179 = int_to_ptr.vmem [resolvable:$true] %s178
      %181 = dma.vmem_to_hbm [thread:$0]  %s179, 128, %s5, [#allocation4]
    $region33: #{tpu_custom_call.1} parent=1 // pred_fallthru
      _
    // Predicated region
    $region34: #{tpu_custom_call.1} parent=1 // pred_check
      _
    $region35: #{tpu_custom_call.1} parent=1 // pred_check_branch
      %183 = sbr.rel (0) target = $region37
    $region36: #{tpu_custom_call.1} parent=1 // pred_region
      %184 = dma.done [#allocation4], 128
    $region37: #{tpu_custom_call.1} parent=1 // pred_fallthru
      _
    %185 = vsyncpa [#allocation3], 1
    %186 = vsyncpa [#allocation6], 1
    %187 = vsyncpa [#allocation4], 1

</llo_original>
